<compile_context>
chip_gen: v6e
topology: v6e:2x2x1
jax: 0.10.0
libtpu: 0.0.40
codegen_flags: <defaults>
</compile_context>

<pallas_src>
import math

import numpy as np
import jax
import jax.numpy as jnp
from jax.experimental import pallas as pl
from jax.experimental.pallas import tpu as pltpu


# --------------------------------------------------------------------------- #
# Deterministic "parameter" construction (synthetic, no checkpoint loading).
# --------------------------------------------------------------------------- #
def ramlak_filter_matrix(n_det: int, dx: float = 1.0) -> jnp.ndarray:
    """Spatial-domain Ram-Lak ramp filter as a Toeplitz matrix F, so that
    filtered = sino @ F  (convolution along the detector axis)."""
    offs = np.arange(-(n_det - 1), n_det)
    h = np.zeros(offs.shape, dtype=np.float64)
    h[offs == 0] = 1.0 / (4.0 * dx * dx)
    odd = (offs % 2) != 0
    h[odd] = -1.0 / (np.pi * offs[odd] * dx) ** 2
    # F[k, j] = h[j - k]
    k = np.arange(n_det)[:, None]
    j = np.arange(n_det)[None, :]
    F = h[(j - k) + (n_det - 1)]
    return jnp.asarray(F, dtype=jnp.float32)


def parallel_beam_matrix(n_angles: int, n_det: int, im_size: int) -> jnp.ndarray:
    """Dense parallel-beam ray-transform matrix A with shape (n_angles, n_det, n_pix).
    Adjoint (back-projection) is x[p] = sum_{a,d} A[a, d, p] * y[a, d]."""
    n_pix = im_size * im_size
    thetas = np.pi * np.arange(n_angles) / n_angles
    xs = np.arange(im_size) - (im_size - 1) / 2.0
    X, Y = np.meshgrid(xs, xs, indexing="ij")
    px = X.ravel()
    py = Y.ravel()
    det_spacing = (im_size * math.sqrt(2.0)) / n_det
    A = np.zeros((n_angles, n_det, n_pix), dtype=np.float32)
    for a, th in enumerate(thetas):
        t = px * math.cos(th) + py * math.sin(th)
        pos = t / det_spacing + (n_det - 1) / 2.0
        i0 = np.floor(pos).astype(np.int64)
        w = (pos - i0).astype(np.float32)
        for p in range(n_pix):
            b = i0[p]
            if 0 <= b < n_det:
                A[a, b, p] += 1.0 - w[p]
            if 0 <= b + 1 < n_det:
                A[a, b + 1, p] += w[p]
    return jnp.asarray(A)


def build_fbp_matrix(filt_mat: jnp.ndarray, ray_mat: jnp.ndarray) -> jnp.ndarray:
    """Fold the ramp filter into the system matrix (one-time setup, plain XLA).

    M[a, d, p] = sum_e F[d, e] * A[a, e, p]   ->  flattened to (A*D, n_pix), bf16.
    With this fold:  x[p] = sum_{a,d} y[a, d] * M[a, d, p]  reproduces
    filter-then-adjoint exactly (linear operators compose).
    """
    A, D, P = ray_mat.shape
    M = jnp.einsum("de,aep->adp", filt_mat, ray_mat)       # (A, D, P), f32
    return M.reshape(A * D, P).astype(jnp.bfloat16)


# --------------------------------------------------------------------------- #
# Pallas kernels.
# --------------------------------------------------------------------------- #
def fbp_matmul_single_kernel(y_ref, m_ref, o_ref):
    # Whole K reduction resident in VMEM: one bf16 MXU GEMM, f32 accumulation,
    # dense lane-aligned (TM, TN) store. No scratch, no pl.when.
    o_ref[...] = jnp.dot(y_ref[...], m_ref[...], preferred_element_type=jnp.float32)


def fbp_matmul_ksplit_kernel(y_ref, m_ref, o_ref):
    # K split across the last grid axis; the f32 output block is resident
    # across it (its index_map ignores k), so accumulate directly into o_ref.
    k = pl.program_id(2)
    part = jnp.dot(y_ref[...], m_ref[...], preferred_element_type=jnp.float32)

    @pl.when(k == 0)
    def _():
        o_ref[...] = part

    @pl.when(k > 0)
    def _():
        o_ref[...] += part


# --------------------------------------------------------------------------- #
# Wrapper with robust tile selection.
# --------------------------------------------------------------------------- #
def _round_up(x: int, m: int) -> int:
    return ((x + m - 1) // m) * m


def _choose_tiles(BC: int, K: int, P: int):
    LANE, SUB = 128, 8
    BC_pad = _round_up(BC, SUB)
    if BC_pad > 256:
        BC_pad = _round_up(BC_pad, 256)
        TM = 256                      # large batch: amortize the M-matrix stream
    else:
        TM = BC_pad                   # small batch: single batch block
    K_pad = _round_up(K, LANE)
    P_pad = _round_up(P, LANE)
    m_blocks = BC_pad // TM

    # TN: prefer wide lane-dense tiles (unmasked stores, v6e 256-wide MXU), but
    # keep >= 2 parallel output blocks overall when possible (v7x: 2 TensorCores).
    TN = None
    for cand in (512, 256, 128):
        if P_pad % cand == 0 and m_blocks * (P_pad // cand) >= 2:
            TN = cand
            break
    if TN is None:
        for cand in (512, 256, 128):
            if P_pad % cand == 0:
                TN = cand
                break

    # TK: largest 128-multiple divisor of K_pad whose double-buffered footprint
    # fits a budget sized against v7x's 64 MiB physical VMEM per TensorCore.
    budget = 24 * 1024 * 1024
    TK = LANE
    for cand in range(K_pad, 0, -LANE):
        if K_pad % cand:
            continue
        fp = 2 * (TM * cand * 2 + cand * TN * 2) + 2 * TM * TN * 4
        if fp <= budget:
            TK = cand
            break
    footprint = 2 * (TM * TK * 2 + TK * TN * 2) + 2 * TM * TN * 4
    return BC_pad, K_pad, P_pad, TM, TN, TK, footprint


def fbp_forward(y: jnp.ndarray, fbp_mat: jnp.ndarray) -> jnp.ndarray:
    """y: (B, C, n_angles, n_det) sinogram -> image (B, C, H, W).

    fbp_mat: (n_angles * n_det, n_pix) bf16 folded filter + adjoint matrix.
    """
    B, C, A, D = y.shape
    K, P = fbp_mat.shape
    assert K == A * D
    H = W = int(round(math.sqrt(P)))
    assert H * W == P, "pixel count must correspond to a square image"
    BC = B * C

    BC_pad, K_pad, P_pad, TM, TN, TK, footprint = _choose_tiles(BC, K, P)

    # bf16 operands prepared once in the wrapper (halves sinogram DMA bytes,
    # removes any in-kernel per-step cast); MXU accumulates in f32.
    y2 = y.reshape(BC, K).astype(jnp.bfloat16)
    if (BC_pad, K_pad) != (BC, K):
        y2 = jnp.pad(y2, ((0, BC_pad - BC), (0, K_pad - K)))
    m2 = fbp_mat
    if (K_pad, P_pad) != (K, P):
        m2 = jnp.pad(m2, ((0, K_pad - K), (0, P_pad - P)))

    k_steps = K_pad // TK
    cost = pl.CostEstimate(
        flops=2 * BC_pad * K_pad * P_pad,
        transcendentals=0,
        bytes_accessed=BC_pad * K_pad * 2 + K_pad * P_pad * 2 + BC_pad * P_pad * 4,
    )
    vmem_limit = int(min(max(2 * footprint, 16 * 1024 * 1024), 48 * 1024 * 1024))

    if k_steps == 1:
        # Collapsed grid: whole reduction in one shot per output block.
        grid = (BC_pad // TM, P_pad // TN)
        in_specs = [
            pl.BlockSpec((TM, K_pad), lambda i, j: (i, 0)),   # bf16 sinogram slab
            pl.BlockSpec((K_pad, TN), lambda i, j: (0, j)),   # bf16 folded matrix
        ]
        out_spec = pl.BlockSpec((TM, TN), lambda i, j: (i, j))
        kernel = fbp_matmul_single_kernel
        dims = ("parallel", "parallel")
    else:
        grid = (BC_pad // TM, P_pad // TN, k_steps)
        in_specs = [
            pl.BlockSpec((TM, TK), lambda i, j, k: (i, k)),
            pl.BlockSpec((TK, TN), lambda i, j, k: (k, j)),
        ]
        out_spec = pl.BlockSpec((TM, TN), lambda i, j, k: (i, j))
        kernel = fbp_matmul_ksplit_kernel
        dims = ("parallel", "parallel", "arbitrary")

    out = pl.pallas_call(
        kernel,
        out_shape=jax.ShapeDtypeStruct((BC_pad, P_pad), jnp.float32),
        grid_spec=pltpu.PrefetchScalarGridSpec(
            num_scalar_prefetch=0,
            grid=grid,
            in_specs=in_specs,
            out_specs=out_spec,
        ),
        compiler_params=pltpu.CompilerParams(
            dimension_semantics=dims,
            vmem_limit_bytes=vmem_limit,
        ),
        cost_estimate=cost,
    )(y2, m2)

    return out[:BC, :P].reshape(B, C, H, W)


# --------------------------------------------------------------------------- #
# Reference (plain JAX, full f32, explicit filter-then-adjoint) for verification.
# --------------------------------------------------------------------------- #
def fbp_reference(y, filt_mat, ray_mat):
    B, C, A, D = y.shape
    n_pix = ray_mat.shape[-1]
    H = W = int(round(math.sqrt(n_pix)))
    yf = jnp.einsum("bcad,de->bcae", y, filt_mat)     # ramp filter along detector
    x = jnp.einsum("bcae,aep->bcp", yf, ray_mat)      # adjoint / back-projection
    return x.reshape(B, C, H, W)


if __name__ == "__main__":
    # Small, TPU-friendly sizes.
    B, C = 2, 4
    n_angles, n_det = 16, 128          # K = A*D = 2048
    im_size = 16                       # image is 16 x 16 -> n_pix = 256

    key = jax.random.PRNGKey(0)
    y = jax.random.normal(key, (B, C, n_angles, n_det), dtype=jnp.float32)

    filt_mat = ramlak_filter_matrix(n_det)                    # (D, D)      f32
    ray_mat = parallel_beam_matrix(n_angles, n_det, im_size)  # (A, D, P)   f32
    fbp_mat = build_fbp_matrix(filt_mat, ray_mat)             # (A*D, P)    bf16 (folded)

    x = fbp_forward(y, fbp_mat)
    x = jax.block_until_ready(x)

    x_ref = jax.block_until_ready(fbp_reference(y, filt_mat, ray_mat))
    err = float(jnp.max(jnp.abs(x - x_ref)) / (jnp.max(jnp.abs(x_ref)) + 1e-6))
    assert err < 2e-2, f"mismatch vs reference: rel err {err}"

    print("KERNEL_OK")
</pallas_src>

<mosaic_0001>
module attributes {stable_mosaic.version = 11 : i64} {
  func.func @fbp_matmul_single_kernel(%arg0: i32, %arg1: i32, %arg2: memref<8x2048xbf16, #tpu.memory_space<vmem>>, %arg3: memref<2048x128xbf16, #tpu.memory_space<vmem>>, %arg4: memref<8x128xf32, #tpu.memory_space<vmem>>) attributes {dimension_semantics = [#tpu.dimension_semantics<parallel>, #tpu.dimension_semantics<parallel>], iteration_bounds = array<i64: 1, 2>, scalar_prefetch = 0 : i64, scratch_operands = 0 : i64, tpu.core_type = #tpu.core_type<tc>, window_params = [{transform_indices = @transform_0, window_bounds = array<i64: 8, 2048>}, {transform_indices = @transform_1, window_bounds = array<i64: 2048, 128>}, {transform_indices = @transform_2, window_bounds = array<i64: 8, 128>}]} {
    %c0 = arith.constant 0 : index
    %c0_0 = arith.constant 0 : index
    %0 = vector.load %arg2[%c0, %c0_0] : memref<8x2048xbf16, #tpu.memory_space<vmem>>, vector<8x2048xbf16>
    %c0_1 = arith.constant 0 : index
    %c0_2 = arith.constant 0 : index
    %1 = vector.load %arg3[%c0_1, %c0_2] : memref<2048x128xbf16, #tpu.memory_space<vmem>>, vector<2048x128xbf16>
    %cst = arith.constant dense<0.000000e+00> : vector<8x128xf32>
    %2 = tpu.matmul %0, %1, %cst {dimension_numbers = #tpu.dot_dimension_numbers<[1], [0], [0], [1], [0, 0, 1, 1], [], []>} : vector<8x2048xbf16>, vector<2048x128xbf16>, vector<8x128xf32> -> vector<8x128xf32>
    %c0_3 = arith.constant 0 : index
    %c0_4 = arith.constant 0 : index
    %3 = vector.load %arg4[%c0_3, %c0_4] : memref<8x128xf32, #tpu.memory_space<vmem>>, vector<8x128xf32>
    tpu.vector_store %arg4[%c0_3, %c0_4], %2 {strides = array<i32>} : memref<8x128xf32, #tpu.memory_space<vmem>>, vector<8x128xf32>,
    return
  }
  func.func @transform_0(%arg0: i32, %arg1: i32) -> (i32, i32) {
    %c0_i32 = arith.constant 0 : i32
    %c0_i32_0 = arith.constant 0 : i32
    return %arg0, %c0_i32 : i32, i32
  }
  func.func @transform_1(%arg0: i32, %arg1: i32) -> (i32, i32) {
    %c0_i32 = arith.constant 0 : i32
    %c0_i32_0 = arith.constant 0 : i32
    return %c0_i32, %arg1 : i32, i32
  }
  func.func @transform_2(%arg0: i32, %arg1: i32) -> (i32, i32) {
    %c0_i32 = arith.constant 0 : i32
    return %arg0, %arg1 : i32, i32
  }
}

</mosaic_0001>

<llo_original>
// kernel: tpu_custom_call.1
$region0: #{tpu_custom_call.1}
  #allocation0 [shape = 'u32[]', space=smem, size = 0x4, offset = 0x4, fixed_abs, tag = 'smem constant byte address 0x4 - core index']
  #allocation1 [shape = 'u32[144,128]{1,0:T(1,128)}', space=vmem, size = 0x12000, scoped, tag = 'internal scratch']
  %s0 = inlined_call_operand.hbm [shape: bf16[8,2048], index: 0, kind: input, shape index: {}]
  %s1 = inlined_call_operand.hbm [shape: bf16[2048,256], index: 1, kind: input, shape index: {}]
  %s2 = inlined_call_operand.hbm [shape: f32[8,256], index: 2, kind: output, shape index: {}]
  %s3 = sld [smem:[#allocation0]]
  $region49: #{tpu_custom_call.1} parent=0
    _
  %s5 = ssub.s32 1, %s3
  %s6 = scalar_select 0, %s5, %s3
  $region1: #{tpu_custom_call.1} parent=0
    #allocation2 [shape = 'u8[32768]{0}', space=vmem, size = 0x8000, scoped, tag = 'input window, operand 0, single buffered']
    #allocation3 [shape = 's32[2]{0}', space=sflag, size = 0x8, scoped, tag = 'scoped memory for tpu_custom_call.1']
    #allocation4 [shape = 's32[2]{0}', space=sflag, size = 0x8, scoped, tag = 'scoped memory for tpu_custom_call.1']
    #allocation5 [shape = 'u8[1048576]{0}', space=vmem, size = 0x100000, scoped, tag = 'input window, operand 1']
    #allocation6 [shape = 's32[2]{0}', space=sflag, size = 0x8, scoped, tag = 'scoped memory for tpu_custom_call.1']
    #allocation7 [shape = 'u8[8192]{0}', space=vmem, size = 0x2000, scoped, tag = 'output window, operand 0']
    %7 = vsyncpa [#allocation3], 0
    %8 = vsyncpa [#allocation6], 0
    %s9 = scalar_lea.sflag [#allocation6], 1
    %10 = vsyncpa %s9, 0
    %11 = vsyncpa [#allocation4], 0
    %s12 = scalar_lea.sflag [#allocation4], 1
    %13 = vsyncpa %s12, 0
    loop: start=0, step=1, limit=4
    $region2: #{tpu_custom_call.1} parent=1 // loop_pre_header
      _
    $region3: #{tpu_custom_call.1} parent=1 // loop_header
      %s15 = sphi 0, %s19
      %p16 = scmp.ge.s32.totalorder %s15, 4
      %s22 = sphi 0, %s34
      %s23 = sphi 0, %s30
      %s24 = sphi 0, %s22
      %s25 = sphi 0, %s23
      %s26 = sphi 0, %s24
      %s27 = sphi 0, %s25
      %s37 = sphi 0, %s39
      %s40 = sphi 0, %s37
      %s41 = sphi 0, %s40
      %s57 = sphi 0, %s41
      %s63 = sphi 0, %s65
      %s66 = sphi 0, %s63
      %s67 = sphi 0, %s66
      %s83 = sphi 0, %s67
      %s91 = sphi 0, %s93
      %s94 = sphi 0, %s91
      %s95 = sphi 0, %s94
      %s111 = sphi 0, %s95
    $region4: #{tpu_custom_call.1} parent=1 // loop_header_branch
      %18 = sbr.rel (%p16) target = $region8
    $region5: #{tpu_custom_call.1} parent=1 // loop_body
      %s20 = ssub.s32 %s15, 1
      %s21 = ssub.s32 %s15, 2
      %s28 = sadd.s32 1, %s23
      %p29 = scmp.ge.s32.totalorder %s28, 2
      %s30 = scalar_select %p29, 0, %s28
      %s31 = sadd.s32 1, %s22
      %s32 = scalar_select %p29, %s31, %s22
      %p33 = scmp.ge.s32.totalorder %s32, 1
      %s34 = scalar_select %p33, 0, %s32
      %s35 = ssub.s32 %s22, %s34
      %p36 = scmp.eq.s32.totalorder %s35, 0
      %s38 = sadd.s32 %s37, 1
      %s39 = scalar_select %p36, %s37, %s38
      %p42 = pneg %p36
      %p43 = scmp.eq.s32.totalorder %s15, 1
      %p44 = por %p42, %p43
      %p45 = scmp.ne.s32.totalorder %s37, %s40
      %p46 = scmp.eq.s32.totalorder %s15, 0
      %p47 = por %p45, %p46
      %p48 = scmp.ne.s32.totalorder %s37, %s40
      %p49 = scmp.eq.s32.totalorder %s20, 1
      %p50 = por %p48, %p49
      %p51 = scmp.ne.s32.totalorder %s40, %s41
      %p52 = scmp.eq.s32.totalorder %s20, 0
      %p53 = por %p51, %p52
      %p54 = scmp.ne.s32.totalorder %s40, %s41
      %p55 = scmp.eq.s32.totalorder %s21, 1
      %p56 = por %p54, %p55
      %p58 = scmp.ne.s32.totalorder %s41, %s57
      %p59 = scmp.eq.s32.totalorder %s21, 0
      %p60 = por %p58, %p59
      %s61 = ssub.s32 %s23, %s30
      %p62 = scmp.eq.s32.totalorder %s61, 0
      %s64 = sadd.s32 %s63, 1
      %s65 = scalar_select %p62, %s63, %s64
      %p68 = pneg %p62
      %p69 = scmp.eq.s32.totalorder %s15, 1
      %p70 = por %p68, %p69
      %p71 = scmp.ne.s32.totalorder %s63, %s66
      %p72 = scmp.eq.s32.totalorder %s15, 0
      %p73 = por %p71, %p72
      %p74 = scmp.ne.s32.totalorder %s63, %s66
      %p75 = scmp.eq.s32.totalorder %s20, 1
      %p76 = por %p74, %p75
      %p77 = scmp.ne.s32.totalorder %s66, %s67
      %p78 = scmp.eq.s32.totalorder %s20, 0
      %p79 = por %p77, %p78
      %p80 = scmp.ne.s32.totalorder %s66, %s67
      %p81 = scmp.eq.s32.totalorder %s21, 1
      %p82 = por %p80, %p81
      %p84 = scmp.ne.s32.totalorder %s67, %s83
      %p85 = scmp.eq.s32.totalorder %s21, 0
      %p86 = por %p84, %p85
      %s87 = ssub.s32 %s22, %s34
      %s88 = ssub.s32 %s23, %s30
      %s89 = sor.u32 %s87, %s88
      %p90 = scmp.eq.s32.totalorder %s89, 0
      %s92 = sadd.s32 %s91, 1
      %s93 = scalar_select %p90, %s91, %s92
      %p96 = pneg %p90
      %p97 = scmp.eq.s32.totalorder %s15, 1
      %p98 = por %p96, %p97
      %p99 = scmp.ne.s32.totalorder %s91, %s94
      %p100 = scmp.eq.s32.totalorder %s15, 0
      %p101 = por %p99, %p100
      %p102 = scmp.ne.s32.totalorder %s91, %s94
      %p103 = scmp.eq.s32.totalorder %s20, 1
      %p104 = por %p102, %p103
      %p105 = scmp.ne.s32.totalorder %s94, %s95
      %p106 = scmp.eq.s32.totalorder %s20, 0
      %p107 = por %p105, %p106
      %p108 = scmp.ne.s32.totalorder %s94, %s95
      %p109 = scmp.eq.s32.totalorder %s21, 1
      %p110 = por %p108, %p109
      %p112 = scmp.ne.s32.totalorder %s95, %s111
      %p113 = scmp.eq.s32.totalorder %s21, 0
      %p114 = por %p112, %p113
      %p115 = scmp.le.s32.totalorder 1, %s15
      %p116 = scmp.lt.s32.totalorder %s15, 3
      %p117 = pnand %p115, %p116
      %p118 = pneg %p117
      // Predicated region
      $region9: #{tpu_custom_call.1} parent=5 // pred_check
        _
      $region10: #{tpu_custom_call.1} parent=5 // pred_check_branch
        %120 = sbr.rel (%p117) target = $region12
      $region11: #{tpu_custom_call.1} parent=5 // pred_region
        %s121 = ssub.s32 %s15, 1
        // Predicated region
        $region13: #{tpu_custom_call.1} parent=11 // pred_check
          %p122 = pneg %p53
        $region14: #{tpu_custom_call.1} parent=11 // pred_check_branch
          %124 = sbr.rel (%p122) target = $region16
        $region15: #{tpu_custom_call.1} parent=11 // pred_region
          %s126 = ssub.s32 1024, 1024
          %127 = vsyncadd [#allocation3], %s126
          %s128 = smul.addr %s24, 16
          %s129 = smul.addr %s128, 64
          %s130 = scalar_lea.hbm %s0, %s129
          %s132 = sshll.u32 [#allocation2], 4
          %s133 = int_to_ptr.vmem [resolvable:$true] %s132
          %135 = dma.hbm_to_vmem [thread:$0]  %s130, 1024, %s133, [#allocation3]
        $region16: #{tpu_custom_call.1} parent=11 // pred_fallthru
          _
      $region12: #{tpu_custom_call.1} parent=5 // pred_fallthru
        _
      %p136 = scmp.lt.s32.totalorder %s15, 2
      // Predicated region
      $region17: #{tpu_custom_call.1} parent=5 // pred_check
        %p137 = pneg %p136
      $region18: #{tpu_custom_call.1} parent=5 // pred_check_branch
        %139 = sbr.rel (%p137) target = $region20
      $region19: #{tpu_custom_call.1} parent=5 // pred_region
        // Predicated region
        $region21: #{tpu_custom_call.1} parent=19 // pred_check
          %p140 = pneg %p73
        $region22: #{tpu_custom_call.1} parent=19 // pred_check_branch
          %142 = sbr.rel (%p140) target = $region24
        $region23: #{tpu_custom_call.1} parent=19 // pred_region
          %s143 = sand.u32 %s63, 1
          %s144 = scalar_lea.sflag [#allocation6], %s143
          %s145 = sand.u32 %s63, 1
          %s146 = smul.addr %s145, 1024
          %s147 = scalar_lea.vmem [#allocation5], %s146
          %s149 = ssub.s32 16384, 16384
          %150 = vsyncadd %s144, %s149
          %s151 = smul.addr %s23, 64
          %s152 = scalar_lea.hbm %s1, %s151
          %s153 = sshll.u32 %s147, 4
          %s154 = int_to_ptr.vmem [resolvable:$true] %s153
          %159 = dma.hbm_to_vmem [thread:$0]  %s152, 16384, %s154, %s144, 128, 64, 4
        $region24: #{tpu_custom_call.1} parent=19 // pred_fallthru
          _
      $region20: #{tpu_custom_call.1} parent=5 // pred_fallthru
        _
      %p160 = scmp.le.s32.totalorder 1, %s15
      %p161 = scmp.lt.s32.totalorder %s15, 3
      %p162 = pnand %p160, %p161
      %p163 = pneg %p162
      // Predicated region
      $region25: #{tpu_custom_call.1} parent=5 // pred_check
        _
      $region26: #{tpu_custom_call.1} parent=5 // pred_check_branch
        %165 = sbr.rel (%p162) target = $region28
      $region27: #{tpu_custom_call.1} parent=5 // pred_region
        %s166 = ssub.s32 %s15, 1
        // Predicated region
        $region29: #{tpu_custom_call.1} parent=27 // pred_check
          %p167 = pneg %p53
        $region30: #{tpu_custom_call.1} parent=27 // pred_check_branch
          %169 = sbr.rel (%p167) target = $region32
        $region31: #{tpu_custom_call.1} parent=27 // pred_region
          %170 = dma.done [#allocation3], 1024
        $region32: #{tpu_custom_call.1} parent=27 // pred_fallthru
          _
        %s171 = sand.u32 %s66, 1
        %s172 = scalar_lea.sflag [#allocation6], %s171
        %s173 = sand.u32 %s66, 1
        %s174 = smul.addr %s173, 1024
        %s175 = scalar_lea.vmem [#allocation5], %s174
        // Predicated region
        $region33: #{tpu_custom_call.1} parent=27 // pred_check
          %p176 = pneg %p79
        $region34: #{tpu_custom_call.1} parent=27 // pred_check_branch
          %178 = sbr.rel (%p176) target = $region36
        $region35: #{tpu_custom_call.1} parent=27 // pred_region
          %179 = dma.done %s172, 16384
        $region36: #{tpu_custom_call.1} parent=27 // pred_fallthru
          _
        %p180 = pneg %p53
        %p181 = pneg %p50
        %s182 = sand.u32 %s66, 1
        %s183 = scalar_lea.sflag [#allocation6], %s182
        %s184 = sand.u32 %s66, 1
        %s185 = smul.addr %s184, 1024
        %s186 = scalar_lea.vmem [#allocation5], %s185
        %p187 = pneg %p79
        %p188 = pneg %p76
        %p189 = pneg %p107
        %p190 = pneg %p104
        %s191 = sand.u32 %s94, 1
        %s192 = scalar_lea.sflag [#allocation4], %s191
        %s193 = sand.u32 %s94, 1
        %s194 = smul.addr %s193, 8
        %s195 = scalar_lea.vmem [#allocation7], %s194
        %v197 = vld [vmem:[#allocation2] sm:$0xff]
        %v198 = vld [vmem:[#allocation2 + $0x8] sm:$0xff]
        %v199 = vld [vmem:[#allocation2 + $0x10] sm:$0xff]
        %v200 = vld [vmem:[#allocation2 + $0x18] sm:$0xff]
        %v201 = vld [vmem:[#allocation2 + $0x20] sm:$0xff]
        %v202 = vld [vmem:[#allocation2 + $0x28] sm:$0xff]
        %v203 = vld [vmem:[#allocation2 + $0x30] sm:$0xff]
        %v204 = vld [vmem:[#allocation2 + $0x38] sm:$0xff]
        %v205 = vld [vmem:[%s175] sm:$0xf]
        %v206 = vld [vmem:[%s175 + $0x4] sm:$0xf]
        %v207 = vld [vmem:[%s175 + $0x8] sm:$0xf]
        %v208 = vld [vmem:[%s175 + $0xc] sm:$0xf]
        %v209 = vld [vmem:[%s175 + $0x10] sm:$0xf]
        %v210 = vld [vmem:[%s175 + $0x14] sm:$0xf]
        %v211 = vld [vmem:[%s175 + $0x18] sm:$0xf]
        %v212 = vld [vmem:[%s175 + $0x1c] sm:$0xf]
        %v213 = vld [vmem:[%s175 + $0x20] sm:$0xf]
        %v214 = vld [vmem:[%s175 + $0x24] sm:$0xf]
        %v215 = vld [vmem:[%s175 + $0x28] sm:$0xf]
        %v216 = vld [vmem:[%s175 + $0x2c] sm:$0xf]
        %v217 = vld [vmem:[%s175 + $0x30] sm:$0xf]
        %v218 = vld [vmem:[%s175 + $0x34] sm:$0xf]
        %v219 = vld [vmem:[%s175 + $0x38] sm:$0xf]
        %v220 = vld [vmem:[%s175 + $0x3c] sm:$0xf]
        %v221 = vld [vmem:[%s175 + $0x40] sm:$0xf]
        %v222 = vld [vmem:[%s175 + $0x44] sm:$0xf]
        %v223 = vld [vmem:[%s175 + $0x48] sm:$0xf]
        %v224 = vld [vmem:[%s175 + $0x4c] sm:$0xf]
        %v225 = vld [vmem:[%s175 + $0x50] sm:$0xf]
        %v226 = vld [vmem:[%s175 + $0x54] sm:$0xf]
        %v227 = vld [vmem:[%s175 + $0x58] sm:$0xf]
        %v228 = vld [vmem:[%s175 + $0x5c] sm:$0xf]
        %v229 = vld [vmem:[%s175 + $0x60] sm:$0xf]
        %v230 = vld [vmem:[%s175 + $0x64] sm:$0xf]
        %v231 = vld [vmem:[%s175 + $0x68] sm:$0xf]
        %v232 = vld [vmem:[%s175 + $0x6c] sm:$0xf]
        %v233 = vld [vmem:[%s175 + $0x70] sm:$0xf]
        %v234 = vld [vmem:[%s175 + $0x74] sm:$0xf]
        %v235 = vld [vmem:[%s175 + $0x78] sm:$0xf]
        %v236 = vld [vmem:[%s175 + $0x7c] sm:$0xf]
        %v237 = vld [vmem:[%s175 + $0x80] sm:$0xf]
        %v238 = vld [vmem:[%s175 + $0x84] sm:$0xf]
        %v239 = vld [vmem:[%s175 + $0x88] sm:$0xf]
        %v240 = vld [vmem:[%s175 + $0x8c] sm:$0xf]
        %v241 = vld [vmem:[%s175 + $0x90] sm:$0xf]
        %v242 = vld [vmem:[%s175 + $0x94] sm:$0xf]
        %v243 = vld [vmem:[%s175 + $0x98] sm:$0xf]
        %v244 = vld [vmem:[%s175 + $0x9c] sm:$0xf]
        %v245 = vld [vmem:[%s175 + $0xa0] sm:$0xf]
        %v246 = vld [vmem:[%s175 + $0xa4] sm:$0xf]
        %v247 = vld [vmem:[%s175 + $0xa8] sm:$0xf]
        %v248 = vld [vmem:[%s175 + $0xac] sm:$0xf]
        %v249 = vld [vmem:[%s175 + $0xb0] sm:$0xf]
        %v250 = vld [vmem:[%s175 + $0xb4] sm:$0xf]
        %v251 = vld [vmem:[%s175 + $0xb8] sm:$0xf]
        %v252 = vld [vmem:[%s175 + $0xbc] sm:$0xf]
        %v253 = vld [vmem:[%s175 + $0xc0] sm:$0xf]
        %v254 = vld [vmem:[%s175 + $0xc4] sm:$0xf]
        %v255 = vld [vmem:[%s175 + $0xc8] sm:$0xf]
        %v256 = vld [vmem:[%s175 + $0xcc] sm:$0xf]
        %v257 = vld [vmem:[%s175 + $0xd0] sm:$0xf]
        %v258 = vld [vmem:[%s175 + $0xd4] sm:$0xf]
        %v259 = vld [vmem:[%s175 + $0xd8] sm:$0xf]
        %v260 = vld [vmem:[%s175 + $0xdc] sm:$0xf]
        %v261 = vld [vmem:[%s175 + $0xe0] sm:$0xf]
        %v262 = vld [vmem:[%s175 + $0xe4] sm:$0xf]
        %v263 = vld [vmem:[%s175 + $0xe8] sm:$0xf]
        %v264 = vld [vmem:[%s175 + $0xec] sm:$0xf]
        %v265 = vld [vmem:[%s175 + $0xf0] sm:$0xf]
        %v266 = vld [vmem:[%s175 + $0xf4] sm:$0xf]
        %v267 = vld [vmem:[%s175 + $0xf8] sm:$0xf]
        %v268 = vld [vmem:[%s175 + $0xfc] sm:$0xf]
        %v269 = vld [vmem:[%s175 + $0x100] sm:$0xf]
        %v270 = vld [vmem:[%s175 + $0x104] sm:$0xf]
        %v271 = vld [vmem:[%s175 + $0x108] sm:$0xf]
        %v272 = vld [vmem:[%s175 + $0x10c] sm:$0xf]
        %v273 = vld [vmem:[%s175 + $0x110] sm:$0xf]
        %v274 = vld [vmem:[%s175 + $0x114] sm:$0xf]
        %v275 = vld [vmem:[%s175 + $0x118] sm:$0xf]
        %v276 = vld [vmem:[%s175 + $0x11c] sm:$0xf]
        %v277 = vld [vmem:[%s175 + $0x120] sm:$0xf]
        %v278 = vld [vmem:[%s175 + $0x124] sm:$0xf]
        %v279 = vld [vmem:[%s175 + $0x128] sm:$0xf]
        %v280 = vld [vmem:[%s175 + $0x12c] sm:$0xf]
        %v281 = vld [vmem:[%s175 + $0x130] sm:$0xf]
        %v282 = vld [vmem:[%s175 + $0x134] sm:$0xf]
        %v283 = vld [vmem:[%s175 + $0x138] sm:$0xf]
        %v284 = vld [vmem:[%s175 + $0x13c] sm:$0xf]
        %v285 = vld [vmem:[%s175 + $0x140] sm:$0xf]
        %v286 = vld [vmem:[%s175 + $0x144] sm:$0xf]
        %v287 = vld [vmem:[%s175 + $0x148] sm:$0xf]
        %v288 = vld [vmem:[%s175 + $0x14c] sm:$0xf]
        %v289 = vld [vmem:[%s175 + $0x150] sm:$0xf]
        %v290 = vld [vmem:[%s175 + $0x154] sm:$0xf]
        %v291 = vld [vmem:[%s175 + $0x158] sm:$0xf]
        %v292 = vld [vmem:[%s175 + $0x15c] sm:$0xf]
        %v293 = vld [vmem:[%s175 + $0x160] sm:$0xf]
        %v294 = vld [vmem:[%s175 + $0x164] sm:$0xf]
        %v295 = vld [vmem:[%s175 + $0x168] sm:$0xf]
        %v296 = vld [vmem:[%s175 + $0x16c] sm:$0xf]
        %v297 = vld [vmem:[%s175 + $0x170] sm:$0xf]
        %v298 = vld [vmem:[%s175 + $0x174] sm:$0xf]
        %v299 = vld [vmem:[%s175 + $0x178] sm:$0xf]
        %v300 = vld [vmem:[%s175 + $0x17c] sm:$0xf]
        %v301 = vld [vmem:[%s175 + $0x180] sm:$0xf]
        %v302 = vld [vmem:[%s175 + $0x184] sm:$0xf]
        %v303 = vld [vmem:[%s175 + $0x188] sm:$0xf]
        %v304 = vld [vmem:[%s175 + $0x18c] sm:$0xf]
        %v305 = vld [vmem:[%s175 + $0x190] sm:$0xf]
        %v306 = vld [vmem:[%s175 + $0x194] sm:$0xf]
        %v307 = vld [vmem:[%s175 + $0x198] sm:$0xf]
        %v308 = vld [vmem:[%s175 + $0x19c] sm:$0xf]
        %v309 = vld [vmem:[%s175 + $0x1a0] sm:$0xf]
        %v310 = vld [vmem:[%s175 + $0x1a4] sm:$0xf]
        %v311 = vld [vmem:[%s175 + $0x1a8] sm:$0xf]
        %v312 = vld [vmem:[%s175 + $0x1ac] sm:$0xf]
        %v313 = vld [vmem:[%s175 + $0x1b0] sm:$0xf]
        %v314 = vld [vmem:[%s175 + $0x1b4] sm:$0xf]
        %v315 = vld [vmem:[%s175 + $0x1b8] sm:$0xf]
        %v316 = vld [vmem:[%s175 + $0x1bc] sm:$0xf]
        %v317 = vld [vmem:[%s175 + $0x1c0] sm:$0xf]
        %v318 = vld [vmem:[%s175 + $0x1c4] sm:$0xf]
        %v319 = vld [vmem:[%s175 + $0x1c8] sm:$0xf]
        %v320 = vld [vmem:[%s175 + $0x1cc] sm:$0xf]
        %v321 = vld [vmem:[%s175 + $0x1d0] sm:$0xf]
        %v322 = vld [vmem:[%s175 + $0x1d4] sm:$0xf]
        %v323 = vld [vmem:[%s175 + $0x1d8] sm:$0xf]
        %v324 = vld [vmem:[%s175 + $0x1dc] sm:$0xf]
        %v325 = vld [vmem:[%s175 + $0x1e0] sm:$0xf]
        %v326 = vld [vmem:[%s175 + $0x1e4] sm:$0xf]
        %v327 = vld [vmem:[%s175 + $0x1e8] sm:$0xf]
        %v328 = vld [vmem:[%s175 + $0x1ec] sm:$0xf]
        %v329 = vld [vmem:[%s175 + $0x1f0] sm:$0xf]
        %v330 = vld [vmem:[%s175 + $0x1f4] sm:$0xf]
        %v331 = vld [vmem:[%s175 + $0x1f8] sm:$0xf]
        %v332 = vld [vmem:[%s175 + $0x1fc] sm:$0xf]
        %v333 = vld [vmem:[%s175 + $0x200] sm:$0xf]
        %v334 = vld [vmem:[%s175 + $0x204] sm:$0xf]
        %v335 = vld [vmem:[%s175 + $0x208] sm:$0xf]
        %v336 = vld [vmem:[%s175 + $0x20c] sm:$0xf]
        %v337 = vld [vmem:[%s175 + $0x210] sm:$0xf]
        %v338 = vld [vmem:[%s175 + $0x214] sm:$0xf]
        %v339 = vld [vmem:[%s175 + $0x218] sm:$0xf]
        %v340 = vld [vmem:[%s175 + $0x21c] sm:$0xf]
        %v341 = vld [vmem:[%s175 + $0x220] sm:$0xf]
        %v342 = vld [vmem:[%s175 + $0x224] sm:$0xf]
        %v343 = vld [vmem:[%s175 + $0x228] sm:$0xf]
        %v344 = vld [vmem:[%s175 + $0x22c] sm:$0xf]
        %v345 = vld [vmem:[%s175 + $0x230] sm:$0xf]
        %v346 = vld [vmem:[%s175 + $0x234] sm:$0xf]
        %v347 = vld [vmem:[%s175 + $0x238] sm:$0xf]
        %v348 = vld [vmem:[%s175 + $0x23c] sm:$0xf]
        %v349 = vld [vmem:[%s175 + $0x240] sm:$0xf]
        %v350 = vld [vmem:[%s175 + $0x244] sm:$0xf]
        %v351 = vld [vmem:[%s175 + $0x248] sm:$0xf]
        %v352 = vld [vmem:[%s175 + $0x24c] sm:$0xf]
        %v353 = vld [vmem:[%s175 + $0x250] sm:$0xf]
        %v354 = vld [vmem:[%s175 + $0x254] sm:$0xf]
        %v355 = vld [vmem:[%s175 + $0x258] sm:$0xf]
        %v356 = vld [vmem:[%s175 + $0x25c] sm:$0xf]
        %v357 = vld [vmem:[%s175 + $0x260] sm:$0xf]
        %v358 = vld [vmem:[%s175 + $0x264] sm:$0xf]
        %v359 = vld [vmem:[%s175 + $0x268] sm:$0xf]
        %v360 = vld [vmem:[%s175 + $0x26c] sm:$0xf]
        %v361 = vld [vmem:[%s175 + $0x270] sm:$0xf]
        %v362 = vld [vmem:[%s175 + $0x274] sm:$0xf]
        %v363 = vld [vmem:[%s175 + $0x278] sm:$0xf]
        %v364 = vld [vmem:[%s175 + $0x27c] sm:$0xf]
        %v365 = vld [vmem:[%s175 + $0x280] sm:$0xf]
        %v366 = vld [vmem:[%s175 + $0x284] sm:$0xf]
        %v367 = vld [vmem:[%s175 + $0x288] sm:$0xf]
        %v368 = vld [vmem:[%s175 + $0x28c] sm:$0xf]
        %v369 = vld [vmem:[%s175 + $0x290] sm:$0xf]
        %v370 = vld [vmem:[%s175 + $0x294] sm:$0xf]
        %v371 = vld [vmem:[%s175 + $0x298] sm:$0xf]
        %v372 = vld [vmem:[%s175 + $0x29c] sm:$0xf]
        %v373 = vld [vmem:[%s175 + $0x2a0] sm:$0xf]
        %v374 = vld [vmem:[%s175 + $0x2a4] sm:$0xf]
        %v375 = vld [vmem:[%s175 + $0x2a8] sm:$0xf]
        %v376 = vld [vmem:[%s175 + $0x2ac] sm:$0xf]
        %v377 = vld [vmem:[%s175 + $0x2b0] sm:$0xf]
        %v378 = vld [vmem:[%s175 + $0x2b4] sm:$0xf]
        %v379 = vld [vmem:[%s175 + $0x2b8] sm:$0xf]
        %v380 = vld [vmem:[%s175 + $0x2bc] sm:$0xf]
        %v381 = vld [vmem:[%s175 + $0x2c0] sm:$0xf]
        %v382 = vld [vmem:[%s175 + $0x2c4] sm:$0xf]
        %v383 = vld [vmem:[%s175 + $0x2c8] sm:$0xf]
        %v384 = vld [vmem:[%s175 + $0x2cc] sm:$0xf]
        %v385 = vld [vmem:[%s175 + $0x2d0] sm:$0xf]
        %v386 = vld [vmem:[%s175 + $0x2d4] sm:$0xf]
        %v387 = vld [vmem:[%s175 + $0x2d8] sm:$0xf]
        %v388 = vld [vmem:[%s175 + $0x2dc] sm:$0xf]
        %v389 = vld [vmem:[%s175 + $0x2e0] sm:$0xf]
        %v390 = vld [vmem:[%s175 + $0x2e4] sm:$0xf]
        %v391 = vld [vmem:[%s175 + $0x2e8] sm:$0xf]
        %v392 = vld [vmem:[%s175 + $0x2ec] sm:$0xf]
        %v393 = vld [vmem:[%s175 + $0x2f0] sm:$0xf]
        %v394 = vld [vmem:[%s175 + $0x2f4] sm:$0xf]
        %v395 = vld [vmem:[%s175 + $0x2f8] sm:$0xf]
        %v396 = vld [vmem:[%s175 + $0x2fc] sm:$0xf]
        %v397 = vld [vmem:[%s175 + $0x300] sm:$0xf]
        %v398 = vld [vmem:[%s175 + $0x304] sm:$0xf]
        %v399 = vld [vmem:[%s175 + $0x308] sm:$0xf]
        %v400 = vld [vmem:[%s175 + $0x30c] sm:$0xf]
        %v401 = vld [vmem:[%s175 + $0x310] sm:$0xf]
        %v402 = vld [vmem:[%s175 + $0x314] sm:$0xf]
        %v403 = vld [vmem:[%s175 + $0x318] sm:$0xf]
        %v404 = vld [vmem:[%s175 + $0x31c] sm:$0xf]
        %v405 = vld [vmem:[%s175 + $0x320] sm:$0xf]
        %v406 = vld [vmem:[%s175 + $0x324] sm:$0xf]
        %v407 = vld [vmem:[%s175 + $0x328] sm:$0xf]
        %v408 = vld [vmem:[%s175 + $0x32c] sm:$0xf]
        %v409 = vld [vmem:[%s175 + $0x330] sm:$0xf]
        %v410 = vld [vmem:[%s175 + $0x334] sm:$0xf]
        %v411 = vld [vmem:[%s175 + $0x338] sm:$0xf]
        %v412 = vld [vmem:[%s175 + $0x33c] sm:$0xf]
        %v413 = vld [vmem:[%s175 + $0x340] sm:$0xf]
        %v414 = vld [vmem:[%s175 + $0x344] sm:$0xf]
        %v415 = vld [vmem:[%s175 + $0x348] sm:$0xf]
        %v416 = vld [vmem:[%s175 + $0x34c] sm:$0xf]
        %v417 = vld [vmem:[%s175 + $0x350] sm:$0xf]
        %v418 = vld [vmem:[%s175 + $0x354] sm:$0xf]
        %v419 = vld [vmem:[%s175 + $0x358] sm:$0xf]
        %v420 = vld [vmem:[%s175 + $0x35c] sm:$0xf]
        %v421 = vld [vmem:[%s175 + $0x360] sm:$0xf]
        %v422 = vld [vmem:[%s175 + $0x364] sm:$0xf]
        %v423 = vld [vmem:[%s175 + $0x368] sm:$0xf]
        %v424 = vld [vmem:[%s175 + $0x36c] sm:$0xf]
        %v425 = vld [vmem:[%s175 + $0x370] sm:$0xf]
        %v426 = vld [vmem:[%s175 + $0x374] sm:$0xf]
        %v427 = vld [vmem:[%s175 + $0x378] sm:$0xf]
        %v428 = vld [vmem:[%s175 + $0x37c] sm:$0xf]
        %v429 = vld [vmem:[%s175 + $0x380] sm:$0xf]
        %v430 = vld [vmem:[%s175 + $0x384] sm:$0xf]
        %v431 = vld [vmem:[%s175 + $0x388] sm:$0xf]
        %v432 = vld [vmem:[%s175 + $0x38c] sm:$0xf]
        %v433 = vld [vmem:[%s175 + $0x390] sm:$0xf]
        %v434 = vld [vmem:[%s175 + $0x394] sm:$0xf]
        %v435 = vld [vmem:[%s175 + $0x398] sm:$0xf]
        %v436 = vld [vmem:[%s175 + $0x39c] sm:$0xf]
        %v437 = vld [vmem:[%s175 + $0x3a0] sm:$0xf]
        %v438 = vld [vmem:[%s175 + $0x3a4] sm:$0xf]
        %v439 = vld [vmem:[%s175 + $0x3a8] sm:$0xf]
        %v440 = vld [vmem:[%s175 + $0x3ac] sm:$0xf]
        %v441 = vld [vmem:[%s175 + $0x3b0] sm:$0xf]
        %v442 = vld [vmem:[%s175 + $0x3b4] sm:$0xf]
        %v443 = vld [vmem:[%s175 + $0x3b8] sm:$0xf]
        %v444 = vld [vmem:[%s175 + $0x3bc] sm:$0xf]
        %v445 = vld [vmem:[%s175 + $0x3c0] sm:$0xf]
        %v446 = vld [vmem:[%s175 + $0x3c4] sm:$0xf]
        %v447 = vld [vmem:[%s175 + $0x3c8] sm:$0xf]
        %v448 = vld [vmem:[%s175 + $0x3cc] sm:$0xf]
        %v449 = vld [vmem:[%s175 + $0x3d0] sm:$0xf]
        %v450 = vld [vmem:[%s175 + $0x3d4] sm:$0xf]
        %v451 = vld [vmem:[%s175 + $0x3d8] sm:$0xf]
        %v452 = vld [vmem:[%s175 + $0x3dc] sm:$0xf]
        %v453 = vld [vmem:[%s175 + $0x3e0] sm:$0xf]
        %v454 = vld [vmem:[%s175 + $0x3e4] sm:$0xf]
        %v455 = vld [vmem:[%s175 + $0x3e8] sm:$0xf]
        %v456 = vld [vmem:[%s175 + $0x3ec] sm:$0xf]
        %v457 = vld [vmem:[%s175 + $0x3f0] sm:$0xf]
        %v458 = vld [vmem:[%s175 + $0x3f4] sm:$0xf]
        %v459 = vld [vmem:[%s175 + $0x3f8] sm:$0xf]
        %v460 = vld [vmem:[%s175 + $0x3fc] sm:$0xf]
        %v469 = vunpack.c.l.b16 %v197
        %v470 = vunpack.c.h.b16 %v197
        %v471 = vunpack.c.l.b16 %v198
        %v472 = vunpack.c.h.b16 %v198
        %v473 = vunpack.c.l.b16 %v199
        %v474 = vunpack.c.h.b16 %v199
        %v475 = vunpack.c.l.b16 %v200
        %v476 = vunpack.c.h.b16 %v200
        %v477 = vunpack.c.l.b16 %v201
        %v478 = vunpack.c.h.b16 %v201
        %v479 = vunpack.c.l.b16 %v202
        %v480 = vunpack.c.h.b16 %v202
        %v481 = vunpack.c.l.b16 %v203
        %v482 = vunpack.c.h.b16 %v203
        %v483 = vunpack.c.l.b16 %v204
        %v484 = vunpack.c.h.b16 %v204
        %v485 = vpack.c.b16 %v469, %v469
        %v486 = vpack.c.b16 %v470, %v470
        %v487 = vpack.c.b16 %v471, %v471
        %v488 = vpack.c.b16 %v472, %v472
        %v489 = vpack.c.b16 %v473, %v473
        %v490 = vpack.c.b16 %v474, %v474
        %v491 = vpack.c.b16 %v475, %v475
        %v492 = vpack.c.b16 %v476, %v476
        %v493 = vpack.c.b16 %v477, %v477
        %v494 = vpack.c.b16 %v478, %v478
        %v495 = vpack.c.b16 %v479, %v479
        %v496 = vpack.c.b16 %v480, %v480
        %v497 = vpack.c.b16 %v481, %v481
        %v498 = vpack.c.b16 %v482, %v482
        %v499 = vpack.c.b16 %v483, %v483
        %v500 = vpack.c.b16 %v484, %v484
        %v773 = vunpack.c.l.b16 %v205
        %v774 = vunpack.c.l.b16 %v206
        %v775 = vunpack.c.l.b16 %v207
        %v776 = vunpack.c.l.b16 %v208
        %v777 = vunpack.c.l.b16 %v209
        %v778 = vunpack.c.l.b16 %v210
        %v779 = vunpack.c.l.b16 %v211
        %v780 = vunpack.c.l.b16 %v212
        %v781 = vunpack.c.l.b16 %v213
        %v782 = vunpack.c.l.b16 %v214
        %v783 = vunpack.c.l.b16 %v215
        %v784 = vunpack.c.l.b16 %v216
        %v785 = vunpack.c.l.b16 %v217
        %v786 = vunpack.c.l.b16 %v218
        %v787 = vunpack.c.l.b16 %v219
        %v788 = vunpack.c.l.b16 %v220
        %v789 = vunpack.c.l.b16 %v221
        %v790 = vunpack.c.l.b16 %v222
        %v791 = vunpack.c.l.b16 %v223
        %v792 = vunpack.c.l.b16 %v224
        %v793 = vunpack.c.l.b16 %v225
        %v794 = vunpack.c.l.b16 %v226
        %v795 = vunpack.c.l.b16 %v227
        %v796 = vunpack.c.l.b16 %v228
        %v797 = vunpack.c.l.b16 %v229
        %v798 = vunpack.c.l.b16 %v230
        %v799 = vunpack.c.l.b16 %v231
        %v800 = vunpack.c.l.b16 %v232
        %v801 = vunpack.c.l.b16 %v233
        %v802 = vunpack.c.l.b16 %v234
        %v803 = vunpack.c.l.b16 %v235
        %v804 = vunpack.c.l.b16 %v236
        %v805 = vunpack.c.l.b16 %v237
        %v806 = vunpack.c.l.b16 %v238
        %v807 = vunpack.c.l.b16 %v239
        %v808 = vunpack.c.l.b16 %v240
        %v809 = vunpack.c.l.b16 %v241
        %v810 = vunpack.c.l.b16 %v242
        %v811 = vunpack.c.l.b16 %v243
        %v812 = vunpack.c.l.b16 %v244
        %v813 = vunpack.c.l.b16 %v245
        %v814 = vunpack.c.l.b16 %v246
        %v815 = vunpack.c.l.b16 %v247
        %v816 = vunpack.c.l.b16 %v248
        %v817 = vunpack.c.l.b16 %v249
        %v818 = vunpack.c.l.b16 %v250
        %v819 = vunpack.c.l.b16 %v251
        %v820 = vunpack.c.l.b16 %v252
        %v821 = vunpack.c.l.b16 %v253
        %v822 = vunpack.c.l.b16 %v254
        %v823 = vunpack.c.l.b16 %v255
        %v824 = vunpack.c.l.b16 %v256
        %v825 = vunpack.c.l.b16 %v257
        %v826 = vunpack.c.l.b16 %v258
        %v827 = vunpack.c.l.b16 %v259
        %v828 = vunpack.c.l.b16 %v260
        %v829 = vunpack.c.l.b16 %v261
        %v830 = vunpack.c.l.b16 %v262
        %v831 = vunpack.c.l.b16 %v263
        %v832 = vunpack.c.l.b16 %v264
        %v833 = vunpack.c.l.b16 %v265
        %v834 = vunpack.c.l.b16 %v266
        %v835 = vunpack.c.l.b16 %v267
        %v836 = vunpack.c.l.b16 %v268
        %v837 = vunpack.c.l.b16 %v269
        %v838 = vunpack.c.l.b16 %v270
        %v839 = vunpack.c.l.b16 %v271
        %v840 = vunpack.c.l.b16 %v272
        %v841 = vunpack.c.l.b16 %v273
        %v842 = vunpack.c.l.b16 %v274
        %v843 = vunpack.c.l.b16 %v275
        %v844 = vunpack.c.l.b16 %v276
        %v845 = vunpack.c.l.b16 %v277
        %v846 = vunpack.c.l.b16 %v278
        %v847 = vunpack.c.l.b16 %v279
        %v848 = vunpack.c.l.b16 %v280
        %v849 = vunpack.c.l.b16 %v281
        %v850 = vunpack.c.l.b16 %v282
        %v851 = vunpack.c.l.b16 %v283
        %v852 = vunpack.c.l.b16 %v284
        %v853 = vunpack.c.l.b16 %v285
        %v854 = vunpack.c.l.b16 %v286
        %v855 = vunpack.c.l.b16 %v287
        %v856 = vunpack.c.l.b16 %v288
        %v857 = vunpack.c.l.b16 %v289
        %v858 = vunpack.c.l.b16 %v290
        %v859 = vunpack.c.l.b16 %v291
        %v860 = vunpack.c.l.b16 %v292
        %v861 = vunpack.c.l.b16 %v293
        %v862 = vunpack.c.l.b16 %v294
        %v863 = vunpack.c.l.b16 %v295
        %v864 = vunpack.c.l.b16 %v296
        %v865 = vunpack.c.l.b16 %v297
        %v866 = vunpack.c.l.b16 %v298
        %v867 = vunpack.c.l.b16 %v299
        %v868 = vunpack.c.l.b16 %v300
        %v869 = vunpack.c.l.b16 %v301
        %v870 = vunpack.c.l.b16 %v302
        %v871 = vunpack.c.l.b16 %v303
        %v872 = vunpack.c.l.b16 %v304
        %v873 = vunpack.c.l.b16 %v305
        %v874 = vunpack.c.l.b16 %v306
        %v875 = vunpack.c.l.b16 %v307
        %v876 = vunpack.c.l.b16 %v308
        %v877 = vunpack.c.l.b16 %v309
        %v878 = vunpack.c.l.b16 %v310
        %v879 = vunpack.c.l.b16 %v311
        %v880 = vunpack.c.l.b16 %v312
        %v881 = vunpack.c.l.b16 %v313
        %v882 = vunpack.c.l.b16 %v314
        %v883 = vunpack.c.l.b16 %v315
        %v884 = vunpack.c.l.b16 %v316
        %v885 = vunpack.c.l.b16 %v317
        %v886 = vunpack.c.l.b16 %v318
        %v887 = vunpack.c.l.b16 %v319
        %v888 = vunpack.c.l.b16 %v320
        %v889 = vunpack.c.l.b16 %v321
        %v890 = vunpack.c.l.b16 %v322
        %v891 = vunpack.c.l.b16 %v323
        %v892 = vunpack.c.l.b16 %v324
        %v893 = vunpack.c.l.b16 %v325
        %v894 = vunpack.c.l.b16 %v326
        %v895 = vunpack.c.l.b16 %v327
        %v896 = vunpack.c.l.b16 %v328
        %v897 = vunpack.c.l.b16 %v329
        %v898 = vunpack.c.l.b16 %v330
        %v899 = vunpack.c.l.b16 %v331
        %v900 = vunpack.c.l.b16 %v332
        %v901 = vunpack.c.l.b16 %v333
        %v902 = vunpack.c.l.b16 %v334
        %v903 = vunpack.c.l.b16 %v335
        %v904 = vunpack.c.l.b16 %v336
        %v905 = vunpack.c.l.b16 %v337
        %v906 = vunpack.c.l.b16 %v338
        %v907 = vunpack.c.l.b16 %v339
        %v908 = vunpack.c.l.b16 %v340
        %v909 = vunpack.c.l.b16 %v341
        %v910 = vunpack.c.l.b16 %v342
        %v911 = vunpack.c.l.b16 %v343
        %v912 = vunpack.c.l.b16 %v344
        %v913 = vunpack.c.l.b16 %v345
        %v914 = vunpack.c.l.b16 %v346
        %v915 = vunpack.c.l.b16 %v347
        %v916 = vunpack.c.l.b16 %v348
        %v917 = vunpack.c.l.b16 %v349
        %v918 = vunpack.c.l.b16 %v350
        %v919 = vunpack.c.l.b16 %v351
        %v920 = vunpack.c.l.b16 %v352
        %v921 = vunpack.c.l.b16 %v353
        %v922 = vunpack.c.l.b16 %v354
        %v923 = vunpack.c.l.b16 %v355
        %v924 = vunpack.c.l.b16 %v356
        %v925 = vunpack.c.l.b16 %v357
        %v926 = vunpack.c.l.b16 %v358
        %v927 = vunpack.c.l.b16 %v359
        %v928 = vunpack.c.l.b16 %v360
        %v929 = vunpack.c.l.b16 %v361
        %v930 = vunpack.c.l.b16 %v362
        %v931 = vunpack.c.l.b16 %v363
        %v932 = vunpack.c.l.b16 %v364
        %v933 = vunpack.c.l.b16 %v365
        %v934 = vunpack.c.l.b16 %v366
        %v935 = vunpack.c.l.b16 %v367
        %v936 = vunpack.c.l.b16 %v368
        %v937 = vunpack.c.l.b16 %v369
        %v938 = vunpack.c.l.b16 %v370
        %v939 = vunpack.c.l.b16 %v371
        %v940 = vunpack.c.l.b16 %v372
        %v941 = vunpack.c.l.b16 %v373
        %v942 = vunpack.c.l.b16 %v374
        %v943 = vunpack.c.l.b16 %v375
        %v944 = vunpack.c.l.b16 %v376
        %v945 = vunpack.c.l.b16 %v377
        %v946 = vunpack.c.l.b16 %v378
        %v947 = vunpack.c.l.b16 %v379
        %v948 = vunpack.c.l.b16 %v380
        %v949 = vunpack.c.l.b16 %v381
        %v950 = vunpack.c.l.b16 %v382
        %v951 = vunpack.c.l.b16 %v383
        %v952 = vunpack.c.l.b16 %v384
        %v953 = vunpack.c.l.b16 %v385
        %v954 = vunpack.c.l.b16 %v386
        %v955 = vunpack.c.l.b16 %v387
        %v956 = vunpack.c.l.b16 %v388
        %v957 = vunpack.c.l.b16 %v389
        %v958 = vunpack.c.l.b16 %v390
        %v959 = vunpack.c.l.b16 %v391
        %v960 = vunpack.c.l.b16 %v392
        %v961 = vunpack.c.l.b16 %v393
        %v962 = vunpack.c.l.b16 %v394
        %v963 = vunpack.c.l.b16 %v395
        %v964 = vunpack.c.l.b16 %v396
        %v965 = vunpack.c.l.b16 %v397
        %v966 = vunpack.c.l.b16 %v398
        %v967 = vunpack.c.l.b16 %v399
        %v968 = vunpack.c.l.b16 %v400
        %v969 = vunpack.c.l.b16 %v401
        %v970 = vunpack.c.l.b16 %v402
        %v971 = vunpack.c.l.b16 %v403
        %v972 = vunpack.c.l.b16 %v404
        %v973 = vunpack.c.l.b16 %v405
        %v974 = vunpack.c.l.b16 %v406
        %v975 = vunpack.c.l.b16 %v407
        %v976 = vunpack.c.l.b16 %v408
        %v977 = vunpack.c.l.b16 %v409
        %v978 = vunpack.c.l.b16 %v410
        %v979 = vunpack.c.l.b16 %v411
        %v980 = vunpack.c.l.b16 %v412
        %v981 = vunpack.c.l.b16 %v413
        %v982 = vunpack.c.l.b16 %v414
        %v983 = vunpack.c.l.b16 %v415
        %v984 = vunpack.c.l.b16 %v416
        %v985 = vunpack.c.l.b16 %v417
        %v986 = vunpack.c.l.b16 %v418
        %v987 = vunpack.c.l.b16 %v419
        %v988 = vunpack.c.l.b16 %v420
        %v989 = vunpack.c.l.b16 %v421
        %v990 = vunpack.c.l.b16 %v422
        %v991 = vunpack.c.l.b16 %v423
        %v992 = vunpack.c.l.b16 %v424
        %v993 = vunpack.c.l.b16 %v425
        %v994 = vunpack.c.l.b16 %v426
        %v995 = vunpack.c.l.b16 %v427
        %v996 = vunpack.c.l.b16 %v428
        %v997 = vunpack.c.l.b16 %v429
        %v998 = vunpack.c.l.b16 %v430
        %v999 = vunpack.c.l.b16 %v431
        %v1000 = vunpack.c.l.b16 %v432
        %v1001 = vunpack.c.l.b16 %v433
        %v1002 = vunpack.c.l.b16 %v434
        %v1003 = vunpack.c.l.b16 %v435
        %v1004 = vunpack.c.l.b16 %v436
        %v1005 = vunpack.c.l.b16 %v437
        %v1006 = vunpack.c.l.b16 %v438
        %v1007 = vunpack.c.l.b16 %v439
        %v1008 = vunpack.c.l.b16 %v440
        %v1009 = vunpack.c.l.b16 %v441
        %v1010 = vunpack.c.l.b16 %v442
        %v1011 = vunpack.c.l.b16 %v443
        %v1012 = vunpack.c.l.b16 %v444
        %v1013 = vunpack.c.l.b16 %v445
        %v1014 = vunpack.c.l.b16 %v446
        %v1015 = vunpack.c.l.b16 %v447
        %v1016 = vunpack.c.l.b16 %v448
        %v1017 = vunpack.c.l.b16 %v449
        %v1018 = vunpack.c.l.b16 %v450
        %v1019 = vunpack.c.l.b16 %v451
        %v1020 = vunpack.c.l.b16 %v452
        %v1021 = vunpack.c.l.b16 %v453
        %v1022 = vunpack.c.l.b16 %v454
        %v1023 = vunpack.c.l.b16 %v455
        %v1024 = vunpack.c.l.b16 %v456
        %v1025 = vunpack.c.l.b16 %v457
        %v1026 = vunpack.c.l.b16 %v458
        %v1027 = vunpack.c.l.b16 %v459
        %v1028 = vunpack.c.l.b16 %v460
        %v1029 = vpack.c.b16 %v774, %v773
        %v1030 = vpack.c.b16 %v776, %v775
        %v1031 = vpack.c.b16 %v778, %v777
        %v1032 = vpack.c.b16 %v780, %v779
        %v1033 = vpack.c.b16 %v782, %v781
        %v1034 = vpack.c.b16 %v784, %v783
        %v1035 = vpack.c.b16 %v786, %v785
        %v1036 = vpack.c.b16 %v788, %v787
        %v1037 = vpack.c.b16 %v790, %v789
        %v1038 = vpack.c.b16 %v792, %v791
        %v1039 = vpack.c.b16 %v794, %v793
        %v1040 = vpack.c.b16 %v796, %v795
        %v1041 = vpack.c.b16 %v798, %v797
        %v1042 = vpack.c.b16 %v800, %v799
        %v1043 = vpack.c.b16 %v802, %v801
        %v1044 = vpack.c.b16 %v804, %v803
        %v1045 = vpack.c.b16 %v806, %v805
        %v1046 = vpack.c.b16 %v808, %v807
        %v1047 = vpack.c.b16 %v810, %v809
        %v1048 = vpack.c.b16 %v812, %v811
        %v1049 = vpack.c.b16 %v814, %v813
        %v1050 = vpack.c.b16 %v816, %v815
        %v1051 = vpack.c.b16 %v818, %v817
        %v1052 = vpack.c.b16 %v820, %v819
        %v1053 = vpack.c.b16 %v822, %v821
        %v1054 = vpack.c.b16 %v824, %v823
        %v1055 = vpack.c.b16 %v826, %v825
        %v1056 = vpack.c.b16 %v828, %v827
        %v1057 = vpack.c.b16 %v830, %v829
        %v1058 = vpack.c.b16 %v832, %v831
        %v1059 = vpack.c.b16 %v834, %v833
        %v1060 = vpack.c.b16 %v836, %v835
        %v1061 = vpack.c.b16 %v838, %v837
        %v1062 = vpack.c.b16 %v840, %v839
        %v1063 = vpack.c.b16 %v842, %v841
        %v1064 = vpack.c.b16 %v844, %v843
        %v1065 = vpack.c.b16 %v846, %v845
        %v1066 = vpack.c.b16 %v848, %v847
        %v1067 = vpack.c.b16 %v850, %v849
        %v1068 = vpack.c.b16 %v852, %v851
        %v1069 = vpack.c.b16 %v854, %v853
        %v1070 = vpack.c.b16 %v856, %v855
        %v1071 = vpack.c.b16 %v858, %v857
        %v1072 = vpack.c.b16 %v860, %v859
        %v1073 = vpack.c.b16 %v862, %v861
        %v1074 = vpack.c.b16 %v864, %v863
        %v1075 = vpack.c.b16 %v866, %v865
        %v1076 = vpack.c.b16 %v868, %v867
        %v1077 = vpack.c.b16 %v870, %v869
        %v1078 = vpack.c.b16 %v872, %v871
        %v1079 = vpack.c.b16 %v874, %v873
        %v1080 = vpack.c.b16 %v876, %v875
        %v1081 = vpack.c.b16 %v878, %v877
        %v1082 = vpack.c.b16 %v880, %v879
        %v1083 = vpack.c.b16 %v882, %v881
        %v1084 = vpack.c.b16 %v884, %v883
        %v1085 = vpack.c.b16 %v886, %v885
        %v1086 = vpack.c.b16 %v888, %v887
        %v1087 = vpack.c.b16 %v890, %v889
        %v1088 = vpack.c.b16 %v892, %v891
        %v1089 = vpack.c.b16 %v894, %v893
        %v1090 = vpack.c.b16 %v896, %v895
        %v1091 = vpack.c.b16 %v898, %v897
        %v1092 = vpack.c.b16 %v900, %v899
        %v1093 = vpack.c.b16 %v902, %v901
        %v1094 = vpack.c.b16 %v904, %v903
        %v1095 = vpack.c.b16 %v906, %v905
        %v1096 = vpack.c.b16 %v908, %v907
        %v1097 = vpack.c.b16 %v910, %v909
        %v1098 = vpack.c.b16 %v912, %v911
        %v1099 = vpack.c.b16 %v914, %v913
        %v1100 = vpack.c.b16 %v916, %v915
        %v1101 = vpack.c.b16 %v918, %v917
        %v1102 = vpack.c.b16 %v920, %v919
        %v1103 = vpack.c.b16 %v922, %v921
        %v1104 = vpack.c.b16 %v924, %v923
        %v1105 = vpack.c.b16 %v926, %v925
        %v1106 = vpack.c.b16 %v928, %v927
        %v1107 = vpack.c.b16 %v930, %v929
        %v1108 = vpack.c.b16 %v932, %v931
        %v1109 = vpack.c.b16 %v934, %v933
        %v1110 = vpack.c.b16 %v936, %v935
        %v1111 = vpack.c.b16 %v938, %v937
        %v1112 = vpack.c.b16 %v940, %v939
        %v1113 = vpack.c.b16 %v942, %v941
        %v1114 = vpack.c.b16 %v944, %v943
        %v1115 = vpack.c.b16 %v946, %v945
        %v1116 = vpack.c.b16 %v948, %v947
        %v1117 = vpack.c.b16 %v950, %v949
        %v1118 = vpack.c.b16 %v952, %v951
        %v1119 = vpack.c.b16 %v954, %v953
        %v1120 = vpack.c.b16 %v956, %v955
        %v1121 = vpack.c.b16 %v958, %v957
        %v1122 = vpack.c.b16 %v960, %v959
        %v1123 = vpack.c.b16 %v962, %v961
        %v1124 = vpack.c.b16 %v964, %v963
        %v1125 = vpack.c.b16 %v966, %v965
        %v1126 = vpack.c.b16 %v968, %v967
        %v1127 = vpack.c.b16 %v970, %v969
        %v1128 = vpack.c.b16 %v972, %v971
        %v1129 = vpack.c.b16 %v974, %v973
        %v1130 = vpack.c.b16 %v976, %v975
        %v1131 = vpack.c.b16 %v978, %v977
        %v1132 = vpack.c.b16 %v980, %v979
        %v1133 = vpack.c.b16 %v982, %v981
        %v1134 = vpack.c.b16 %v984, %v983
        %v1135 = vpack.c.b16 %v986, %v985
        %v1136 = vpack.c.b16 %v988, %v987
        %v1137 = vpack.c.b16 %v990, %v989
        %v1138 = vpack.c.b16 %v992, %v991
        %v1139 = vpack.c.b16 %v994, %v993
        %v1140 = vpack.c.b16 %v996, %v995
        %v1141 = vpack.c.b16 %v998, %v997
        %v1142 = vpack.c.b16 %v1000, %v999
        %v1143 = vpack.c.b16 %v1002, %v1001
        %v1144 = vpack.c.b16 %v1004, %v1003
        %v1145 = vpack.c.b16 %v1006, %v1005
        %v1146 = vpack.c.b16 %v1008, %v1007
        %v1147 = vpack.c.b16 %v1010, %v1009
        %v1148 = vpack.c.b16 %v1012, %v1011
        %v1149 = vpack.c.b16 %v1014, %v1013
        %v1150 = vpack.c.b16 %v1016, %v1015
        %v1151 = vpack.c.b16 %v1018, %v1017
        %v1152 = vpack.c.b16 %v1020, %v1019
        %v1153 = vpack.c.b16 %v1022, %v1021
        %v1154 = vpack.c.b16 %v1024, %v1023
        %v1155 = vpack.c.b16 %v1026, %v1025
        %v1156 = vpack.c.b16 %v1028, %v1027
        %1285 = vmatprep.subr.bf16.mxu0 0
        %1286 = vmatpush1.bf16.msra.mxu0 %v1036
        %1287 = vmatprep.subr.bf16.mxu0 0
        %1288 = vmatpush1.bf16.msra.mxu0 %v1035
        %1289 = vmatprep.subr.bf16.mxu0 0
        %1290 = vmatpush1.bf16.msra.mxu0 %v1034
        %1291 = vmatprep.subr.bf16.mxu0 0
        %1292 = vmatpush1.bf16.msra.mxu0 %v1033
        %1293 = vmatprep.subr.bf16.mxu0 0
        %1294 = vmatpush1.bf16.msra.mxu0 %v1032
        %1295 = vmatprep.subr.bf16.mxu0 0
        %1296 = vmatpush1.bf16.msra.mxu0 %v1031
        %1297 = vmatprep.subr.bf16.mxu0 0
        %1298 = vmatpush1.bf16.msra.mxu0 %v1030
        %1299 = vmatprep.subr.bf16.mxu0 0
        %1300 = vmatpush1.bf16.msra.mxu0 %v1029
        %1301 = vmatprep.subr.bf16.mxu0 0
        %1302 = vmatpush2.bf16.msra.mxu0 %v1044
        %1303 = vmatprep.subr.bf16.mxu0 0
        %1304 = vmatpush2.bf16.msra.mxu0 %v1043
        %1305 = vmatprep.subr.bf16.mxu0 0
        %1306 = vmatpush2.bf16.msra.mxu0 %v1042
        %1307 = vmatprep.subr.bf16.mxu0 0
        %1308 = vmatpush2.bf16.msra.mxu0 %v1041
        %1309 = vmatprep.subr.bf16.mxu0 0
        %1310 = vmatpush2.bf16.msra.mxu0 %v1040
        %1311 = vmatprep.subr.bf16.mxu0 0
        %1312 = vmatpush2.bf16.msra.mxu0 %v1039
        %1313 = vmatprep.subr.bf16.mxu0 0
        %1314 = vmatpush2.bf16.msra.mxu0 %v1038
        %1315 = vmatprep.subr.bf16.mxu0 0
        %1316 = vmatpush2.bf16.msra.mxu0 %v1037
        %1317 = vmatprep.mubr.bf16.mxu0 %v486
        %1318 = vmatmul.mubr.bf16.gmra.mxu0 %v485
        %v1319 = vpop.f32.mrf.mxu0
        %v1320 = vadd.f32 0.0, %v1319
        %v1321 = vpop.f32.mrf.mxu0
        %v1322 = vpop.f32.mrf.mxu0
        %v1323 = vpop.f32.mrf.mxu0
        %1324 = vdwg.mxu0
        %1325 = vmatprep.subr.bf16.mxu0 0
        %1326 = vmatpush1.bf16.msra.mxu0 %v1052
        %1327 = vmatprep.subr.bf16.mxu0 0
        %1328 = vmatpush1.bf16.msra.mxu0 %v1051
        %1329 = vmatprep.subr.bf16.mxu0 0
        %1330 = vmatpush1.bf16.msra.mxu0 %v1050
        %1331 = vmatprep.subr.bf16.mxu0 0
        %1332 = vmatpush1.bf16.msra.mxu0 %v1049
        %1333 = vmatprep.subr.bf16.mxu0 0
        %1334 = vmatpush1.bf16.msra.mxu0 %v1048
        %1335 = vmatprep.subr.bf16.mxu0 0
        %1336 = vmatpush1.bf16.msra.mxu0 %v1047
        %1337 = vmatprep.subr.bf16.mxu0 0
        %1338 = vmatpush1.bf16.msra.mxu0 %v1046
        %1339 = vmatprep.subr.bf16.mxu0 0
        %1340 = vmatpush1.bf16.msra.mxu0 %v1045
        %1341 = vmatprep.subr.bf16.mxu0 0
        %1342 = vmatpush2.bf16.msra.mxu0 %v1060
        %1343 = vmatprep.subr.bf16.mxu0 0
        %1344 = vmatpush2.bf16.msra.mxu0 %v1059
        %1345 = vmatprep.subr.bf16.mxu0 0
        %1346 = vmatpush2.bf16.msra.mxu0 %v1058
        %1347 = vmatprep.subr.bf16.mxu0 0
        %1348 = vmatpush2.bf16.msra.mxu0 %v1057
        %1349 = vmatprep.subr.bf16.mxu0 0
        %1350 = vmatpush2.bf16.msra.mxu0 %v1056
        %1351 = vmatprep.subr.bf16.mxu0 0
        %1352 = vmatpush2.bf16.msra.mxu0 %v1055
        %1353 = vmatprep.subr.bf16.mxu0 0
        %1354 = vmatpush2.bf16.msra.mxu0 %v1054
        %1355 = vmatprep.subr.bf16.mxu0 0
        %1356 = vmatpush2.bf16.msra.mxu0 %v1053
        %1357 = vmatprep.mubr.bf16.mxu0 %v488
        %1358 = vmatmul.mubr.bf16.gmra.mxu0 %v487
        %v1359 = vpop.f32.mrf.mxu0
        %v1360 = vadd.f32 %v1320, %v1359
        %v1361 = vpop.f32.mrf.mxu0
        %v1362 = vpop.f32.mrf.mxu0
        %v1363 = vpop.f32.mrf.mxu0
        %1364 = vdwg.mxu0
        %1365 = vmatprep.subr.bf16.mxu0 0
        %1366 = vmatpush1.bf16.msra.mxu0 %v1068
        %1367 = vmatprep.subr.bf16.mxu0 0
        %1368 = vmatpush1.bf16.msra.mxu0 %v1067
        %1369 = vmatprep.subr.bf16.mxu0 0
        %1370 = vmatpush1.bf16.msra.mxu0 %v1066
        %1371 = vmatprep.subr.bf16.mxu0 0
        %1372 = vmatpush1.bf16.msra.mxu0 %v1065
        %1373 = vmatprep.subr.bf16.mxu0 0
        %1374 = vmatpush1.bf16.msra.mxu0 %v1064
        %1375 = vmatprep.subr.bf16.mxu0 0
        %1376 = vmatpush1.bf16.msra.mxu0 %v1063
        %1377 = vmatprep.subr.bf16.mxu0 0
        %1378 = vmatpush1.bf16.msra.mxu0 %v1062
        %1379 = vmatprep.subr.bf16.mxu0 0
        %1380 = vmatpush1.bf16.msra.mxu0 %v1061
        %1381 = vmatprep.subr.bf16.mxu0 0
        %1382 = vmatpush2.bf16.msra.mxu0 %v1076
        %1383 = vmatprep.subr.bf16.mxu0 0
        %1384 = vmatpush2.bf16.msra.mxu0 %v1075
        %1385 = vmatprep.subr.bf16.mxu0 0
        %1386 = vmatpush2.bf16.msra.mxu0 %v1074
        %1387 = vmatprep.subr.bf16.mxu0 0
        %1388 = vmatpush2.bf16.msra.mxu0 %v1073
        %1389 = vmatprep.subr.bf16.mxu0 0
        %1390 = vmatpush2.bf16.msra.mxu0 %v1072
        %1391 = vmatprep.subr.bf16.mxu0 0
        %1392 = vmatpush2.bf16.msra.mxu0 %v1071
        %1393 = vmatprep.subr.bf16.mxu0 0
        %1394 = vmatpush2.bf16.msra.mxu0 %v1070
        %1395 = vmatprep.subr.bf16.mxu0 0
        %1396 = vmatpush2.bf16.msra.mxu0 %v1069
        %1397 = vmatprep.mubr.bf16.mxu0 %v490
        %1398 = vmatmul.mubr.bf16.gmra.mxu0 %v489
        %v1399 = vpop.f32.mrf.mxu0
        %v1400 = vadd.f32 %v1360, %v1399
        %v1401 = vpop.f32.mrf.mxu0
        %v1402 = vpop.f32.mrf.mxu0
        %v1403 = vpop.f32.mrf.mxu0
        %1404 = vdwg.mxu0
        %1405 = vmatprep.subr.bf16.mxu0 0
        %1406 = vmatpush1.bf16.msra.mxu0 %v1084
        %1407 = vmatprep.subr.bf16.mxu0 0
        %1408 = vmatpush1.bf16.msra.mxu0 %v1083
        %1409 = vmatprep.subr.bf16.mxu0 0
        %1410 = vmatpush1.bf16.msra.mxu0 %v1082
        %1411 = vmatprep.subr.bf16.mxu0 0
        %1412 = vmatpush1.bf16.msra.mxu0 %v1081
        %1413 = vmatprep.subr.bf16.mxu0 0
        %1414 = vmatpush1.bf16.msra.mxu0 %v1080
        %1415 = vmatprep.subr.bf16.mxu0 0
        %1416 = vmatpush1.bf16.msra.mxu0 %v1079
        %1417 = vmatprep.subr.bf16.mxu0 0
        %1418 = vmatpush1.bf16.msra.mxu0 %v1078
        %1419 = vmatprep.subr.bf16.mxu0 0
        %1420 = vmatpush1.bf16.msra.mxu0 %v1077
        %1421 = vmatprep.subr.bf16.mxu0 0
        %1422 = vmatpush2.bf16.msra.mxu0 %v1092
        %1423 = vmatprep.subr.bf16.mxu0 0
        %1424 = vmatpush2.bf16.msra.mxu0 %v1091
        %1425 = vmatprep.subr.bf16.mxu0 0
        %1426 = vmatpush2.bf16.msra.mxu0 %v1090
        %1427 = vmatprep.subr.bf16.mxu0 0
        %1428 = vmatpush2.bf16.msra.mxu0 %v1089
        %1429 = vmatprep.subr.bf16.mxu0 0
        %1430 = vmatpush2.bf16.msra.mxu0 %v1088
        %1431 = vmatprep.subr.bf16.mxu0 0
        %1432 = vmatpush2.bf16.msra.mxu0 %v1087
        %1433 = vmatprep.subr.bf16.mxu0 0
        %1434 = vmatpush2.bf16.msra.mxu0 %v1086
        %1435 = vmatprep.subr.bf16.mxu0 0
        %1436 = vmatpush2.bf16.msra.mxu0 %v1085
        %1437 = vmatprep.mubr.bf16.mxu0 %v492
        %1438 = vmatmul.mubr.bf16.gmra.mxu0 %v491
        %v1439 = vpop.f32.mrf.mxu0
        %v1440 = vadd.f32 %v1400, %v1439
        %v1441 = vpop.f32.mrf.mxu0
        %v1442 = vpop.f32.mrf.mxu0
        %v1443 = vpop.f32.mrf.mxu0
        %1444 = vdwg.mxu0
        %1445 = vmatprep.subr.bf16.mxu0 0
        %1446 = vmatpush1.bf16.msra.mxu0 %v1100
        %1447 = vmatprep.subr.bf16.mxu0 0
        %1448 = vmatpush1.bf16.msra.mxu0 %v1099
        %1449 = vmatprep.subr.bf16.mxu0 0
        %1450 = vmatpush1.bf16.msra.mxu0 %v1098
        %1451 = vmatprep.subr.bf16.mxu0 0
        %1452 = vmatpush1.bf16.msra.mxu0 %v1097
        %1453 = vmatprep.subr.bf16.mxu0 0
        %1454 = vmatpush1.bf16.msra.mxu0 %v1096
        %1455 = vmatprep.subr.bf16.mxu0 0
        %1456 = vmatpush1.bf16.msra.mxu0 %v1095
        %1457 = vmatprep.subr.bf16.mxu0 0
        %1458 = vmatpush1.bf16.msra.mxu0 %v1094
        %1459 = vmatprep.subr.bf16.mxu0 0
        %1460 = vmatpush1.bf16.msra.mxu0 %v1093
        %1461 = vmatprep.subr.bf16.mxu0 0
        %1462 = vmatpush2.bf16.msra.mxu0 %v1108
        %1463 = vmatprep.subr.bf16.mxu0 0
        %1464 = vmatpush2.bf16.msra.mxu0 %v1107
        %1465 = vmatprep.subr.bf16.mxu0 0
        %1466 = vmatpush2.bf16.msra.mxu0 %v1106
        %1467 = vmatprep.subr.bf16.mxu0 0
        %1468 = vmatpush2.bf16.msra.mxu0 %v1105
        %1469 = vmatprep.subr.bf16.mxu0 0
        %1470 = vmatpush2.bf16.msra.mxu0 %v1104
        %1471 = vmatprep.subr.bf16.mxu0 0
        %1472 = vmatpush2.bf16.msra.mxu0 %v1103
        %1473 = vmatprep.subr.bf16.mxu0 0
        %1474 = vmatpush2.bf16.msra.mxu0 %v1102
        %1475 = vmatprep.subr.bf16.mxu0 0
        %1476 = vmatpush2.bf16.msra.mxu0 %v1101
        %1477 = vmatprep.mubr.bf16.mxu0 %v494
        %1478 = vmatmul.mubr.bf16.gmra.mxu0 %v493
        %v1479 = vpop.f32.mrf.mxu0
        %v1480 = vadd.f32 %v1440, %v1479
        %v1481 = vpop.f32.mrf.mxu0
        %v1482 = vpop.f32.mrf.mxu0
        %v1483 = vpop.f32.mrf.mxu0
        %1484 = vdwg.mxu0
        %1485 = vmatprep.subr.bf16.mxu0 0
        %1486 = vmatpush1.bf16.msra.mxu0 %v1116
        %1487 = vmatprep.subr.bf16.mxu0 0
        %1488 = vmatpush1.bf16.msra.mxu0 %v1115
        %1489 = vmatprep.subr.bf16.mxu0 0
        %1490 = vmatpush1.bf16.msra.mxu0 %v1114
        %1491 = vmatprep.subr.bf16.mxu0 0
        %1492 = vmatpush1.bf16.msra.mxu0 %v1113
        %1493 = vmatprep.subr.bf16.mxu0 0
        %1494 = vmatpush1.bf16.msra.mxu0 %v1112
        %1495 = vmatprep.subr.bf16.mxu0 0
        %1496 = vmatpush1.bf16.msra.mxu0 %v1111
        %1497 = vmatprep.subr.bf16.mxu0 0
        %1498 = vmatpush1.bf16.msra.mxu0 %v1110
        %1499 = vmatprep.subr.bf16.mxu0 0
        %1500 = vmatpush1.bf16.msra.mxu0 %v1109
        %1501 = vmatprep.subr.bf16.mxu0 0
        %1502 = vmatpush2.bf16.msra.mxu0 %v1124
        %1503 = vmatprep.subr.bf16.mxu0 0
        %1504 = vmatpush2.bf16.msra.mxu0 %v1123
        %1505 = vmatprep.subr.bf16.mxu0 0
        %1506 = vmatpush2.bf16.msra.mxu0 %v1122
        %1507 = vmatprep.subr.bf16.mxu0 0
        %1508 = vmatpush2.bf16.msra.mxu0 %v1121
        %1509 = vmatprep.subr.bf16.mxu0 0
        %1510 = vmatpush2.bf16.msra.mxu0 %v1120
        %1511 = vmatprep.subr.bf16.mxu0 0
        %1512 = vmatpush2.bf16.msra.mxu0 %v1119
        %1513 = vmatprep.subr.bf16.mxu0 0
        %1514 = vmatpush2.bf16.msra.mxu0 %v1118
        %1515 = vmatprep.subr.bf16.mxu0 0
        %1516 = vmatpush2.bf16.msra.mxu0 %v1117
        %1517 = vmatprep.mubr.bf16.mxu0 %v496
        %1518 = vmatmul.mubr.bf16.gmra.mxu0 %v495
        %v1519 = vpop.f32.mrf.mxu0
        %v1520 = vadd.f32 %v1480, %v1519
        %v1521 = vpop.f32.mrf.mxu0
        %v1522 = vpop.f32.mrf.mxu0
        %v1523 = vpop.f32.mrf.mxu0
        %1524 = vdwg.mxu0
        %1525 = vmatprep.subr.bf16.mxu0 0
        %1526 = vmatpush1.bf16.msra.mxu0 %v1132
        %1527 = vmatprep.subr.bf16.mxu0 0
        %1528 = vmatpush1.bf16.msra.mxu0 %v1131
        %1529 = vmatprep.subr.bf16.mxu0 0
        %1530 = vmatpush1.bf16.msra.mxu0 %v1130
        %1531 = vmatprep.subr.bf16.mxu0 0
        %1532 = vmatpush1.bf16.msra.mxu0 %v1129
        %1533 = vmatprep.subr.bf16.mxu0 0
        %1534 = vmatpush1.bf16.msra.mxu0 %v1128
        %1535 = vmatprep.subr.bf16.mxu0 0
        %1536 = vmatpush1.bf16.msra.mxu0 %v1127
        %1537 = vmatprep.subr.bf16.mxu0 0
        %1538 = vmatpush1.bf16.msra.mxu0 %v1126
        %1539 = vmatprep.subr.bf16.mxu0 0
        %1540 = vmatpush1.bf16.msra.mxu0 %v1125
        %1541 = vmatprep.subr.bf16.mxu0 0
        %1542 = vmatpush2.bf16.msra.mxu0 %v1140
        %1543 = vmatprep.subr.bf16.mxu0 0
        %1544 = vmatpush2.bf16.msra.mxu0 %v1139
        %1545 = vmatprep.subr.bf16.mxu0 0
        %1546 = vmatpush2.bf16.msra.mxu0 %v1138
        %1547 = vmatprep.subr.bf16.mxu0 0
        %1548 = vmatpush2.bf16.msra.mxu0 %v1137
        %1549 = vmatprep.subr.bf16.mxu0 0
        %1550 = vmatpush2.bf16.msra.mxu0 %v1136
        %1551 = vmatprep.subr.bf16.mxu0 0
        %1552 = vmatpush2.bf16.msra.mxu0 %v1135
        %1553 = vmatprep.subr.bf16.mxu0 0
        %1554 = vmatpush2.bf16.msra.mxu0 %v1134
        %1555 = vmatprep.subr.bf16.mxu0 0
        %1556 = vmatpush2.bf16.msra.mxu0 %v1133
        %1557 = vmatprep.mubr.bf16.mxu0 %v498
        %1558 = vmatmul.mubr.bf16.gmra.mxu0 %v497
        %v1559 = vpop.f32.mrf.mxu0
        %v1560 = vadd.f32 %v1520, %v1559
        %v1561 = vpop.f32.mrf.mxu0
        %v1562 = vpop.f32.mrf.mxu0
        %v1563 = vpop.f32.mrf.mxu0
        %1564 = vdwg.mxu0
        %1565 = vmatprep.subr.bf16.mxu0 0
        %1566 = vmatpush1.bf16.msra.mxu0 %v1148
        %1567 = vmatprep.subr.bf16.mxu0 0
        %1568 = vmatpush1.bf16.msra.mxu0 %v1147
        %1569 = vmatprep.subr.bf16.mxu0 0
        %1570 = vmatpush1.bf16.msra.mxu0 %v1146
        %1571 = vmatprep.subr.bf16.mxu0 0
        %1572 = vmatpush1.bf16.msra.mxu0 %v1145
        %1573 = vmatprep.subr.bf16.mxu0 0
        %1574 = vmatpush1.bf16.msra.mxu0 %v1144
        %1575 = vmatprep.subr.bf16.mxu0 0
        %1576 = vmatpush1.bf16.msra.mxu0 %v1143
        %1577 = vmatprep.subr.bf16.mxu0 0
        %1578 = vmatpush1.bf16.msra.mxu0 %v1142
        %1579 = vmatprep.subr.bf16.mxu0 0
        %1580 = vmatpush1.bf16.msra.mxu0 %v1141
        %1581 = vmatprep.subr.bf16.mxu0 0
        %1582 = vmatpush2.bf16.msra.mxu0 %v1156
        %1583 = vmatprep.subr.bf16.mxu0 0
        %1584 = vmatpush2.bf16.msra.mxu0 %v1155
        %1585 = vmatprep.subr.bf16.mxu0 0
        %1586 = vmatpush2.bf16.msra.mxu0 %v1154
        %1587 = vmatprep.subr.bf16.mxu0 0
        %1588 = vmatpush2.bf16.msra.mxu0 %v1153
        %1589 = vmatprep.subr.bf16.mxu0 0
        %1590 = vmatpush2.bf16.msra.mxu0 %v1152
        %1591 = vmatprep.subr.bf16.mxu0 0
        %1592 = vmatpush2.bf16.msra.mxu0 %v1151
        %1593 = vmatprep.subr.bf16.mxu0 0
        %1594 = vmatpush2.bf16.msra.mxu0 %v1150
        %1595 = vmatprep.subr.bf16.mxu0 0
        %1596 = vmatpush2.bf16.msra.mxu0 %v1149
        %1597 = vmatprep.mubr.bf16.mxu0 %v500
        %1598 = vmatmul.mubr.bf16.gmra.mxu0 %v499
        %v1599 = vpop.f32.mrf.mxu0
        %v1600 = vadd.f32 %v1560, %v1599
        %v1601 = vpop.f32.mrf.mxu0
        %v1602 = vpop.f32.mrf.mxu0
        %v1603 = vpop.f32.mrf.mxu0
        %1604 = vdwg.mxu0
        %1605 = vst [vmem:[%s195] sm:$0xff] %v1600
        %s1606 = sand.u32 %s94, 1
        %s1607 = scalar_lea.sflag [#allocation4], %s1606
        %s1608 = sand.u32 %s94, 1
        %s1609 = smul.addr %s1608, 8
        %s1610 = scalar_lea.vmem [#allocation7], %s1609
        // Predicated region
        $region37: #{tpu_custom_call.1} parent=27 // pred_check
          %p1611 = pneg %p104
        $region38: #{tpu_custom_call.1} parent=27 // pred_check_branch
          %1613 = sbr.rel (%p1611) target = $region40
        $region39: #{tpu_custom_call.1} parent=27 // pred_region
          %s1615 = ssub.s32 128, 128
          %1616 = vsyncadd %s1607, %s1615
          %s1617 = smul.addr %s24, 2
          %s1618 = sadd.s32 %s25, %s1617
          %s1619 = smul.addr %s1618, 128
          %s1620 = scalar_lea.hbm %s2, %s1619
          %s1622 = sshll.u32 %s1610, 4
          %s1623 = int_to_ptr.vmem [resolvable:$true] %s1622
          %1625 = dma.vmem_to_hbm [thread:$0]  %s1623, 128, %s1620, %s1607
        $region40: #{tpu_custom_call.1} parent=27 // pred_fallthru
          _
      $region28: #{tpu_custom_call.1} parent=5 // pred_fallthru
        _
      %p1626 = scmp.le.s32.totalorder 2, %s15
      // Predicated region
      $region41: #{tpu_custom_call.1} parent=5 // pred_check
        %p1627 = pneg %p1626
      $region42: #{tpu_custom_call.1} parent=5 // pred_check_branch
        %1629 = sbr.rel (%p1627) target = $region44
      $region43: #{tpu_custom_call.1} parent=5 // pred_region
        %s1630 = ssub.s32 %s15, 2
        // Predicated region
        $region45: #{tpu_custom_call.1} parent=43 // pred_check
          %p1631 = pneg %p110
        $region46: #{tpu_custom_call.1} parent=43 // pred_check_branch
          %1633 = sbr.rel (%p1631) target = $region48
        $region47: #{tpu_custom_call.1} parent=43 // pred_region
          %s1634 = sand.u32 %s95, 1
          %s1635 = scalar_lea.sflag [#allocation4], %s1634
          %s1636 = sand.u32 %s95, 1
          %s1637 = smul.addr %s1636, 8
          %s1638 = scalar_lea.vmem [#allocation7], %s1637
          %1639 = dma.done %s1635, 128
        $region48: #{tpu_custom_call.1} parent=43 // pred_fallthru
          _
      $region44: #{tpu_custom_call.1} parent=5 // pred_fallthru
        _
    $region6: #{tpu_custom_call.1} parent=1 // loop_footer
      %s19 = sadd.s32 1, %s15
    $region7: #{tpu_custom_call.1} parent=1 // loop_footer_branch
      %14 = sbr.rel target = $region3
    $region8: #{tpu_custom_call.1} parent=1 // loop_exit
      _
    %1640 = vsyncpa [#allocation3], 1
    %s1641 = scalar_lea.sflag [#allocation3], 1
    %1642 = vsyncpa %s1641, 1
    %1643 = vsyncpa [#allocation6], 1
    %s1644 = scalar_lea.sflag [#allocation6], 1
    %1645 = vsyncpa %s1644, 1
    %1646 = vsyncpa [#allocation4], 1
    %s1647 = scalar_lea.sflag [#allocation4], 1
    %1648 = vsyncpa %s1647, 1

</llo_original>
